<compile_context>
chip_gen: v6e
topology: v6e:2x2x1
jax: 0.10.0
libtpu: 0.0.40
codegen_flags: <defaults>
</compile_context>

<pallas_src>
import jax
import jax.numpy as jnp
from jax.experimental import pallas as pl
from jax.experimental.pallas import tpu as pltpu

HIDDEN_PAD = 128          # lane-dense padded width of the hidden layers
N_LAYERS = 4              # Linear layers in the MLP


def _cdiv(a, b):
    return -(-a // b)


def _round_up(n, m):
    return _cdiv(n, m) * m


def _mlp_kernel(alpha_ref,    # SMEM (scalar prefetch): PReLU slopes (3,)
                x_ref,        # VMEM (TB, fin)            per-step tile
                w0_ref,       # VMEM (fin, 128)           resident
                w_mid_ref,    # VMEM (2, 128, 128)        resident
                w_last_ref,   # VMEM (128, out_dim)       resident
                b_stack_ref,  # VMEM (3, 1, 128)          resident
                b_last_ref,   # VMEM (1, out_dim)         resident
                o_ref):       # VMEM (TB, out_dim)        per-step tile
    # Hoist the scalar PReLU slopes once at kernel entry.
    a0 = alpha_ref[0]
    a1 = alpha_ref[1]
    a2 = alpha_ref[2]

    # Layer 1: Linear(fin -> 64, cols zero-padded to 128 lanes) + PReLU.
    # (Dropout = identity in eval mode.)
    h = jnp.dot(x_ref[...], w0_ref[...], preferred_element_type=jnp.float32)
    h = h + b_stack_ref[0]
    h = jnp.where(h > 0, h, a0 * h)
    # Layer 2: Linear + PReLU.
    h = jnp.dot(h, w_mid_ref[0], preferred_element_type=jnp.float32) + b_stack_ref[1]
    h = jnp.where(h > 0, h, a1 * h)
    # Layer 3: Linear + PReLU.
    h = jnp.dot(h, w_mid_ref[1], preferred_element_type=jnp.float32) + b_stack_ref[2]
    h = jnp.where(h > 0, h, a2 * h)
    # Layer 4: final Linear (no activation) straight into the narrow output.
    out = jnp.dot(h, w_last_ref[...], preferred_element_type=jnp.float32)
    o_ref[...] = (out + b_last_ref[...]).astype(o_ref.dtype)


def sappnet_forward(x, params, *, block_rows=2048):
    """x: (B, mlp_input) f32.  params: packed padded weight/bias arrays + alphas."""
    B, fin = x.shape
    out_dim = params["w_last"].shape[1]

    # Balanced batch tiling: n_steps = cdiv(B, block_rows), TB = round_up(B/n, 8).
    # Row padding is at most a handful of rows (no padding up to a full TB,
    # and no 128-lane padding of x at all).
    n_steps = _cdiv(B, block_rows)
    TB = _round_up(_cdiv(B, n_steps), 8)
    B_pad = n_steps * TB
    if B_pad != B:
        x = jnp.pad(x, ((0, B_pad - B), (0, 0)))

    w0 = params["w0"]            # (fin, 128)
    w_mid = params["w_mid"]      # (2, 128, 128)
    w_last = params["w_last"]    # (128, out_dim)
    b_stack = params["b_stack"]  # (3, 1, 128)
    b_last = params["b_last"]    # (1, out_dim)
    alpha = params["alpha"]      # (3,)
    H = w0.shape[1]

    itemsize = 4
    flops = 2 * B_pad * (fin * H + 2 * H * H + H * out_dim)
    bytes_accessed = itemsize * (B_pad * (fin + out_dim)
                                 + w0.size + w_mid.size + w_last.size
                                 + b_stack.size + b_last.size + alpha.size)

    grid_spec = pltpu.PrefetchScalarGridSpec(
        num_scalar_prefetch=1,                            # alpha -> SMEM
        grid=(n_steps,),
        in_specs=[
            # Un-padded activation tile: full feature width per row.
            pl.BlockSpec((TB, fin), lambda i, a: (i, 0)),
            # Constant index_maps => parameters DMA'd once, VMEM-resident.
            pl.BlockSpec((fin, H), lambda i, a: (0, 0)),
            pl.BlockSpec((2, H, H), lambda i, a: (0, 0, 0)),
            pl.BlockSpec((H, out_dim), lambda i, a: (0, 0)),
            pl.BlockSpec((3, 1, H), lambda i, a: (0, 0, 0)),
            pl.BlockSpec((1, out_dim), lambda i, a: (0, 0)),
        ],
        out_specs=pl.BlockSpec((TB, out_dim), lambda i, a: (i, 0)),
    )

    compiler_kwargs = dict(dimension_semantics=("parallel",))
    if TB > 2048:
        # v5e's default scoped VMEM is only 16 MiB; give headroom for the
        # double-buffered activation tiles when the batch tile is enlarged.
        compiler_kwargs["vmem_limit_bytes"] = 32 * 1024 * 1024

    out = pl.pallas_call(
        _mlp_kernel,
        out_shape=jax.ShapeDtypeStruct((B_pad, out_dim), jnp.float32),
        grid_spec=grid_spec,
        compiler_params=pltpu.CompilerParams(**compiler_kwargs),
        cost_estimate=pl.CostEstimate(flops=flops,
                                      transcendentals=0,
                                      bytes_accessed=bytes_accessed),
    )(alpha, x, w0, w_mid, w_last, b_stack, b_last)

    return out[:B]


def init_params(key, dims):
    """PyTorch-default-style init, packed into lane-padded hidden stacks."""
    assert len(dims) == N_LAYERS + 1
    fin, h1, h2, h3, dout = dims
    ks = jax.random.split(key, N_LAYERS)

    def lin(k, din, dout_):
        kw, kb = jax.random.split(k)
        bound = float(din) ** -0.5
        w = jax.random.uniform(kw, (din, dout_), jnp.float32, -bound, bound)
        b = jax.random.uniform(kb, (dout_,), jnp.float32, -bound, bound)
        return w, b

    w1, b1 = lin(ks[0], fin, h1)
    w2, b2 = lin(ks[1], h1, h2)
    w3, b3 = lin(ks[2], h2, h3)
    w4, b4 = lin(ks[3], h3, dout)

    H = HIDDEN_PAD
    w0 = jnp.zeros((fin, H), jnp.float32).at[:, :h1].set(w1)
    w_mid = jnp.zeros((2, H, H), jnp.float32)
    w_mid = w_mid.at[0, :h1, :h2].set(w2).at[1, :h2, :h3].set(w3)
    w_last = jnp.zeros((H, dout), jnp.float32).at[:h3, :].set(w4)
    b_stack = jnp.zeros((3, 1, H), jnp.float32)
    b_stack = (b_stack.at[0, 0, :h1].set(b1)
                       .at[1, 0, :h2].set(b2)
                       .at[2, 0, :h3].set(b3))
    b_last = b4.reshape(1, dout)
    # nn.PReLU() default: a single slope of 0.25 per PReLU layer.
    alpha = jnp.full((3,), 0.25, dtype=jnp.float32)
    return {"w0": w0, "w_mid": w_mid, "w_last": w_last,
            "b_stack": b_stack, "b_last": b_last, "alpha": alpha}


def reference_forward(x, params):
    """Plain-JAX reference using the same packed parameterisation."""
    hp = jax.lax.Precision.HIGHEST
    a = params["alpha"]
    h = jnp.dot(x, params["w0"], precision=hp) + params["b_stack"][0]
    h = jnp.where(h > 0, h, a[0] * h)
    h = jnp.dot(h, params["w_mid"][0], precision=hp) + params["b_stack"][1]
    h = jnp.where(h > 0, h, a[1] * h)
    h = jnp.dot(h, params["w_mid"][1], precision=hp) + params["b_stack"][2]
    h = jnp.where(h > 0, h, a[2] * h)
    return jnp.dot(h, params["w_last"], precision=hp) + params["b_last"]


if __name__ == "__main__":
    # Sizing implied by SAPPNet.__init__: encoder feature width 28, state_size 2.
    encoder_feat = 28
    state_size = 2
    mlp_input = encoder_feat + state_size * 2        # 32
    dims = (mlp_input, 64, 32, 32, state_size)

    batch = 8
    key = jax.random.PRNGKey(0)
    k_x, k_p = jax.random.split(key)
    x = jax.random.normal(k_x, (batch, mlp_input), dtype=jnp.float32)
    params = init_params(k_p, dims)

    out = jax.block_until_ready(sappnet_forward(x, params))
    ref = reference_forward(x, params)

    assert out.shape == (batch, state_size)
    assert jnp.allclose(out, ref, atol=1e-3, rtol=1e-3), \
        float(jnp.max(jnp.abs(out - ref)))

    print("KERNEL_OK")
</pallas_src>

<mosaic_0001>
module attributes {stable_mosaic.version = 11 : i64} {
  func.func @_mlp_kernel(%arg0: i32, %arg1: memref<3xf32, #tpu.memory_space<smem>>, %arg2: memref<8x32xf32, #tpu.memory_space<vmem>>, %arg3: memref<32x128xf32, #tpu.memory_space<vmem>>, %arg4: memref<2x128x128xf32, #tpu.memory_space<vmem>>, %arg5: memref<128x2xf32, #tpu.memory_space<vmem>>, %arg6: memref<3x1x128xf32, #tpu.memory_space<vmem>>, %arg7: memref<1x2xf32, #tpu.memory_space<vmem>>, %arg8: memref<8x2xf32, #tpu.memory_space<vmem>>) attributes {dimension_semantics = [#tpu.dimension_semantics<parallel>], iteration_bounds = array<i64: 1>, scalar_prefetch = 1 : i64, scratch_operands = 0 : i64, tpu.core_type = #tpu.core_type<tc>, window_params = [{transform_indices = @transform_0, window_bounds = array<i64: 8, 32>}, {pipeline_mode = #tpu.pipeline_mode<synchronous>, transform_indices = @transform_1, window_bounds = array<i64: 32, 128>}, {pipeline_mode = #tpu.pipeline_mode<synchronous>, transform_indices = @transform_2, window_bounds = array<i64: 2, 128, 128>}, {pipeline_mode = #tpu.pipeline_mode<synchronous>, transform_indices = @transform_3, window_bounds = array<i64: 128, 2>}, {pipeline_mode = #tpu.pipeline_mode<synchronous>, transform_indices = @transform_4, window_bounds = array<i64: 3, 1, 128>}, {pipeline_mode = #tpu.pipeline_mode<synchronous>, transform_indices = @transform_5, window_bounds = array<i64: 1, 2>}, {transform_indices = @transform_6, window_bounds = array<i64: 8, 2>}]} {
    %c0 = arith.constant 0 : index
    %0 = memref.load %arg1[%c0] : memref<3xf32, #tpu.memory_space<smem>>
    %c1 = arith.constant 1 : index
    %1 = memref.load %arg1[%c1] : memref<3xf32, #tpu.memory_space<smem>>
    %c2 = arith.constant 2 : index
    %2 = memref.load %arg1[%c2] : memref<3xf32, #tpu.memory_space<smem>>
    %c0_0 = arith.constant 0 : index
    %c0_1 = arith.constant 0 : index
    %3 = vector.load %arg2[%c0_0, %c0_1] : memref<8x32xf32, #tpu.memory_space<vmem>>, vector<8x32xf32>
    %c0_2 = arith.constant 0 : index
    %c0_3 = arith.constant 0 : index
    %4 = vector.load %arg3[%c0_2, %c0_3] : memref<32x128xf32, #tpu.memory_space<vmem>>, vector<32x128xf32>
    %cst = arith.constant dense<0.000000e+00> : vector<8x128xf32>
    %5 = tpu.matmul %3, %4, %cst {dimension_numbers = #tpu.dot_dimension_numbers<[1], [0], [0], [1], [0, 0, 1, 1], [], []>} : vector<8x32xf32>, vector<32x128xf32>, vector<8x128xf32> -> vector<8x128xf32>
    %c0_4 = arith.constant 0 : index
    %c0_5 = arith.constant 0 : index
    %c0_6 = arith.constant 0 : index
    %6 = vector.load %arg6[%c0_4, %c0_5, %c0_6] : memref<3x1x128xf32, #tpu.memory_space<vmem>>, vector<1x1x128xf32>
    %7 = vector.shape_cast %6 : vector<1x1x128xf32> to vector<1x128xf32>
    %8 = vector.broadcast %7 : vector<1x128xf32> to vector<8x128xf32>
    %9 = arith.addf %5, %8 : vector<8x128xf32>
    %cst_7 = arith.constant 0.000000e+00 : f32
    %10 = vector.broadcast %cst_7 : f32 to vector<8x128xf32>
    %11 = arith.cmpf ogt, %9, %10 : vector<8x128xf32>
    %12 = vector.broadcast %0 : f32 to vector<8x128xf32>
    %13 = arith.mulf %12, %9 : vector<8x128xf32>
    %14 = arith.select %11, %9, %13 : vector<8x128xi1>, vector<8x128xf32>
    %c0_8 = arith.constant 0 : index
    %c0_9 = arith.constant 0 : index
    %c0_10 = arith.constant 0 : index
    %15 = vector.load %arg4[%c0_8, %c0_9, %c0_10] : memref<2x128x128xf32, #tpu.memory_space<vmem>>, vector<1x128x128xf32>
    %16 = vector.shape_cast %15 : vector<1x128x128xf32> to vector<128x128xf32>
    %cst_11 = arith.constant dense<0.000000e+00> : vector<8x128xf32>
    %17 = tpu.matmul %14, %16, %cst_11 {dimension_numbers = #tpu.dot_dimension_numbers<[1], [0], [0], [1], [0, 0, 1, 1], [], []>} : vector<8x128xf32>, vector<128x128xf32>, vector<8x128xf32> -> vector<8x128xf32>
    %c1_12 = arith.constant 1 : index
    %c0_13 = arith.constant 0 : index
    %c0_14 = arith.constant 0 : index
    %18 = vector.load %arg6[%c1_12, %c0_13, %c0_14] : memref<3x1x128xf32, #tpu.memory_space<vmem>>, vector<1x1x128xf32>
    %19 = vector.shape_cast %18 : vector<1x1x128xf32> to vector<1x128xf32>
    %20 = vector.broadcast %19 : vector<1x128xf32> to vector<8x128xf32>
    %21 = arith.addf %17, %20 : vector<8x128xf32>
    %cst_15 = arith.constant 0.000000e+00 : f32
    %22 = vector.broadcast %cst_15 : f32 to vector<8x128xf32>
    %23 = arith.cmpf ogt, %21, %22 : vector<8x128xf32>
    %24 = vector.broadcast %1 : f32 to vector<8x128xf32>
    %25 = arith.mulf %24, %21 : vector<8x128xf32>
    %26 = arith.select %23, %21, %25 : vector<8x128xi1>, vector<8x128xf32>
    %c1_16 = arith.constant 1 : index
    %c0_17 = arith.constant 0 : index
    %c0_18 = arith.constant 0 : index
    %27 = vector.load %arg4[%c1_16, %c0_17, %c0_18] : memref<2x128x128xf32, #tpu.memory_space<vmem>>, vector<1x128x128xf32>
    %28 = vector.shape_cast %27 : vector<1x128x128xf32> to vector<128x128xf32>
    %cst_19 = arith.constant dense<0.000000e+00> : vector<8x128xf32>
    %29 = tpu.matmul %26, %28, %cst_19 {dimension_numbers = #tpu.dot_dimension_numbers<[1], [0], [0], [1], [0, 0, 1, 1], [], []>} : vector<8x128xf32>, vector<128x128xf32>, vector<8x128xf32> -> vector<8x128xf32>
    %c2_20 = arith.constant 2 : index
    %c0_21 = arith.constant 0 : index
    %c0_22 = arith.constant 0 : index
    %30 = vector.load %arg6[%c2_20, %c0_21, %c0_22] : memref<3x1x128xf32, #tpu.memory_space<vmem>>, vector<1x1x128xf32>
    %31 = vector.shape_cast %30 : vector<1x1x128xf32> to vector<1x128xf32>
    %32 = vector.broadcast %31 : vector<1x128xf32> to vector<8x128xf32>
    %33 = arith.addf %29, %32 : vector<8x128xf32>
    %cst_23 = arith.constant 0.000000e+00 : f32
    %34 = vector.broadcast %cst_23 : f32 to vector<8x128xf32>
    %35 = arith.cmpf ogt, %33, %34 : vector<8x128xf32>
    %36 = vector.broadcast %2 : f32 to vector<8x128xf32>
    %37 = arith.mulf %36, %33 : vector<8x128xf32>
    %38 = arith.select %35, %33, %37 : vector<8x128xi1>, vector<8x128xf32>
    %c0_24 = arith.constant 0 : index
    %c0_25 = arith.constant 0 : index
    %39 = vector.load %arg5[%c0_24, %c0_25] : memref<128x2xf32, #tpu.memory_space<vmem>>, vector<128x2xf32>
    %cst_26 = arith.constant dense<0.000000e+00> : vector<8x2xf32>
    %40 = tpu.matmul %38, %39, %cst_26 {dimension_numbers = #tpu.dot_dimension_numbers<[1], [0], [0], [1], [0, 0, 1, 1], [], []>} : vector<8x128xf32>, vector<128x2xf32>, vector<8x2xf32> -> vector<8x2xf32>
    %c0_27 = arith.constant 0 : index
    %c0_28 = arith.constant 0 : index
    %41 = vector.load %arg7[%c0_27, %c0_28] : memref<1x2xf32, #tpu.memory_space<vmem>>, vector<1x2xf32>
    %42 = vector.broadcast %41 : vector<1x2xf32> to vector<8x2xf32>
    %43 = arith.addf %40, %42 : vector<8x2xf32>
    %c0_29 = arith.constant 0 : index
    %c0_30 = arith.constant 0 : index
    %44 = vector.load %arg8[%c0_29, %c0_30] : memref<8x2xf32, #tpu.memory_space<vmem>>, vector<8x2xf32>
    tpu.vector_store %arg8[%c0_29, %c0_30], %43 {strides = array<i32>} : memref<8x2xf32, #tpu.memory_space<vmem>>, vector<8x2xf32>,
    return
  }
  func.func @transform_0(%arg0: i32, %arg1: memref<3xf32, #tpu.memory_space<smem>>) -> (i32, i32) {
    %c0_i32 = arith.constant 0 : i32
    %c0_i32_0 = arith.constant 0 : i32
    return %arg0, %c0_i32 : i32, i32
  }
  func.func @transform_1(%arg0: i32, %arg1: memref<3xf32, #tpu.memory_space<smem>>) -> (i32, i32) {
    %c0_i32 = arith.constant 0 : i32
    %c0_i32_0 = arith.constant 0 : i32
    %c0_i32_1 = arith.constant 0 : i32
    return %c0_i32, %c0_i32_0 : i32, i32
  }
  func.func @transform_2(%arg0: i32, %arg1: memref<3xf32, #tpu.memory_space<smem>>) -> (i32, i32, i32) {
    %c0_i32 = arith.constant 0 : i32
    %c0_i32_0 = arith.constant 0 : i32
    %c0_i32_1 = arith.constant 0 : i32
    %c0_i32_2 = arith.constant 0 : i32
    return %c0_i32, %c0_i32_0, %c0_i32_1 : i32, i32, i32
  }
  func.func @transform_3(%arg0: i32, %arg1: memref<3xf32, #tpu.memory_space<smem>>) -> (i32, i32) {
    %c0_i32 = arith.constant 0 : i32
    %c0_i32_0 = arith.constant 0 : i32
    %c0_i32_1 = arith.constant 0 : i32
    return %c0_i32, %c0_i32_0 : i32, i32
  }
  func.func @transform_4(%arg0: i32, %arg1: memref<3xf32, #tpu.memory_space<smem>>) -> (i32, i32, i32) {
    %c0_i32 = arith.constant 0 : i32
    %c0_i32_0 = arith.constant 0 : i32
    %c0_i32_1 = arith.constant 0 : i32
    %c0_i32_2 = arith.constant 0 : i32
    return %c0_i32, %c0_i32_0, %c0_i32_1 : i32, i32, i32
  }
  func.func @transform_5(%arg0: i32, %arg1: memref<3xf32, #tpu.memory_space<smem>>) -> (i32, i32) {
    %c0_i32 = arith.constant 0 : i32
    %c0_i32_0 = arith.constant 0 : i32
    %c0_i32_1 = arith.constant 0 : i32
    return %c0_i32, %c0_i32_0 : i32, i32
  }
  func.func @transform_6(%arg0: i32, %arg1: memref<3xf32, #tpu.memory_space<smem>>) -> (i32, i32) {
    %c0_i32 = arith.constant 0 : i32
    %c0_i32_0 = arith.constant 0 : i32
    return %arg0, %c0_i32 : i32, i32
  }
}

</mosaic_0001>

<llo_original>
// kernel: tpu_custom_call.1
$region0: #{tpu_custom_call.1}
  #allocation0 [shape = 'u32[]', space=smem, size = 0x4, offset = 0x4, fixed_abs, tag = 'smem constant byte address 0x4 - core index']
  #allocation1 [shape = 'u32[144,128]{1,0:T(1,128)}', space=vmem, size = 0x12000, scoped, tag = 'internal scratch']
  #allocation2 [shape = 's32[1]{0}', space=sflag, size = 0x4, scoped, tag = 'scoped memory for tpu_custom_call.1']
  #allocation3 [shape = 'u8[512]{0}', space=smem, size = 0x200, scoped, tag = 'prefetched SMEM operand 0']
  %s0 = inlined_call_operand.vmem [shape: f32[3], index: 0, kind: input, shape index: {}]
  %s1 = inlined_call_operand.vmem [shape: f32[8,32], index: 1, kind: input, shape index: {}]
  %s2 = inlined_call_operand.vmem [shape: f32[32,128], index: 2, kind: input, shape index: {}]
  %s3 = inlined_call_operand.hbm [shape: f32[2,128,128], index: 3, kind: input, shape index: {}]
  %s4 = inlined_call_operand.vmem [shape: f32[128,2], index: 4, kind: input, shape index: {}]
  %s5 = inlined_call_operand.vmem [shape: f32[3,1,128], index: 5, kind: input, shape index: {}]
  %s6 = inlined_call_operand.vmem [shape: f32[1,2], index: 6, kind: input, shape index: {}]
  %s7 = inlined_call_operand.vmem [shape: f32[8,2], index: 7, kind: output, shape index: {}]
  %s8 = sld [smem:[#allocation0]]
  $region38: #{tpu_custom_call.1} parent=0
    _
  %s10 = ssub.s32 1, %s8
  %s11 = scalar_select 0, %s10, %s8
  %s12 = sshll.u32 %s0, 4
  %s13 = int_to_ptr.vmem [resolvable:$true] %s12
  %15 = dma.vmem_to_smem %s13, 16, [#allocation3], [#allocation2]
  %16 = dma.done [#allocation2], 16
  %17 = sfence
  $region1: #{tpu_custom_call.1} parent=0
    #allocation4 [shape = 'u8[131072]{0}', space=vmem, size = 0x20000, scoped, tag = 'input window, operand 3, single buffered']
    #allocation5 [shape = 's32[1]{0}', space=sflag, size = 0x4, scoped, tag = 'scoped memory for tpu_custom_call.1']
    %18 = vsyncpa [#allocation5], 0
    // Predicated region
    $region2: #{tpu_custom_call.1} parent=1 // pred_check
      _
    $region3: #{tpu_custom_call.1} parent=1 // pred_check_branch
      %20 = sbr.rel (0) target = $region5
    $region4: #{tpu_custom_call.1} parent=1 // pred_region
      _
    $region5: #{tpu_custom_call.1} parent=1 // pred_fallthru
      _
    // Predicated region
    $region6: #{tpu_custom_call.1} parent=1 // pred_check
      _
    $region7: #{tpu_custom_call.1} parent=1 // pred_check_branch
      %22 = sbr.rel (0) target = $region9
    $region8: #{tpu_custom_call.1} parent=1 // pred_region
      _
    $region9: #{tpu_custom_call.1} parent=1 // pred_fallthru
      _
    // Predicated region
    $region10: #{tpu_custom_call.1} parent=1 // pred_check
      _
    $region11: #{tpu_custom_call.1} parent=1 // pred_check_branch
      %24 = sbr.rel (0) target = $region13
    $region12: #{tpu_custom_call.1} parent=1 // pred_region
      %s26 = ssub.s32 4096, 4096
      %27 = vsyncadd [#allocation5], %s26
      %s28 = sshll.u32 [#allocation4], 4
      %s29 = int_to_ptr.vmem [resolvable:$true] %s28
      %34 = dma.hbm_to_vmem [thread:$0]  %s3, 4096, %s29, [#allocation5], 128, 128, 8
    $region13: #{tpu_custom_call.1} parent=1 // pred_fallthru
      _
    // Predicated region
    $region14: #{tpu_custom_call.1} parent=1 // pred_check
      _
    $region15: #{tpu_custom_call.1} parent=1 // pred_check_branch
      %36 = sbr.rel (0) target = $region17
    $region16: #{tpu_custom_call.1} parent=1 // pred_region
      _
    $region17: #{tpu_custom_call.1} parent=1 // pred_fallthru
      _
    // Predicated region
    $region18: #{tpu_custom_call.1} parent=1 // pred_check
      _
    $region19: #{tpu_custom_call.1} parent=1 // pred_check_branch
      %38 = sbr.rel (0) target = $region21
    $region20: #{tpu_custom_call.1} parent=1 // pred_region
      _
    $region21: #{tpu_custom_call.1} parent=1 // pred_fallthru
      _
    // Predicated region
    $region22: #{tpu_custom_call.1} parent=1 // pred_check
      _
    $region23: #{tpu_custom_call.1} parent=1 // pred_check_branch
      %40 = sbr.rel (0) target = $region25
    $region24: #{tpu_custom_call.1} parent=1 // pred_region
      _
    $region25: #{tpu_custom_call.1} parent=1 // pred_fallthru
      _
    // Predicated region
    $region26: #{tpu_custom_call.1} parent=1 // pred_check
      _
    $region27: #{tpu_custom_call.1} parent=1 // pred_check_branch
      %42 = sbr.rel (0) target = $region29
    $region28: #{tpu_custom_call.1} parent=1 // pred_region
      %43 = dma.done [#allocation5], 4096
    $region29: #{tpu_custom_call.1} parent=1 // pred_fallthru
      _
    %s44 = sld [smem:[#allocation3]]
    %s45 = sld [smem:[#allocation3 + $0x1]]
    %s46 = sld [smem:[#allocation3 + $0x2]]
    %v47 = vld [vmem:[%s1] sm:$0xff]
    %v48 = vld [vmem:[%s2] sm:$0xff]
    %v49 = vld [vmem:[%s2 + $0x8] sm:$0xff]
    %v50 = vld [vmem:[%s2 + $0x10] sm:$0xff]
    %v51 = vld [vmem:[%s2 + $0x18] sm:$0xff]
    %v52 = vld [vmem:[%s5] sm:$0x1]
    %v54 = vlaneseq
    %v55 = vshrl.u32 %v54, 7
    %v56 = vsub.s32 0, %v55
    %v57 = vrot.slane %v52, %v56
    %vm59 = vcmask 261120
    %v61 = vsel %vm59, %v47, 0
    %63 = vmatprep.subr.mxu0 0.0
    %64 = vmatpush1.msra.mxu0 0.0
    %65 = vmatprep.subr.mxu0 0.0
    %66 = vmatpush1.msra.mxu0 0.0
    %67 = vmatprep.subr.mxu0 0.0
    %68 = vmatpush1.msra.mxu0 0.0
    %69 = vmatprep.subr.mxu0 0.0
    %70 = vmatpush1.msra.mxu0 0.0
    %71 = vmatprep.subr.mxu0 0.0
    %72 = vmatpush1.msra.mxu0 0.0
    %73 = vmatprep.subr.mxu0 0.0
    %74 = vmatpush1.msra.mxu0 0.0
    %75 = vmatprep.subr.mxu0 0.0
    %76 = vmatpush1.msra.mxu0 0.0
    %77 = vmatprep.subr.mxu0 0.0
    %78 = vmatpush1.msra.mxu0 0.0
    %79 = vmatprep.subr.mxu0 0.0
    %80 = vmatpush1.msra.mxu0 0.0
    %81 = vmatprep.subr.mxu0 0.0
    %82 = vmatpush1.msra.mxu0 0.0
    %83 = vmatprep.subr.mxu0 0.0
    %84 = vmatpush1.msra.mxu0 0.0
    %85 = vmatprep.subr.mxu0 0.0
    %86 = vmatpush1.msra.mxu0 0.0
    %87 = vmatprep.subr.mxu0 0.0
    %88 = vmatpush1.msra.mxu0 %v51
    %89 = vmatprep.subr.mxu0 0.0
    %90 = vmatpush1.msra.mxu0 %v50
    %91 = vmatprep.subr.mxu0 0.0
    %92 = vmatpush1.msra.mxu0 %v49
    %93 = vmatprep.subr.mxu0 0.0
    %94 = vmatpush1.msra.mxu0 %v48
    %95 = vmatprep.subr.mxu0 0.0
    %96 = vmatpush2.msra.mxu0 0.0
    %97 = vmatprep.subr.mxu0 0.0
    %98 = vmatpush2.msra.mxu0 0.0
    %99 = vmatprep.subr.mxu0 0.0
    %100 = vmatpush2.msra.mxu0 0.0
    %101 = vmatprep.subr.mxu0 0.0
    %102 = vmatpush2.msra.mxu0 0.0
    %103 = vmatprep.subr.mxu0 0.0
    %104 = vmatpush2.msra.mxu0 0.0
    %105 = vmatprep.subr.mxu0 0.0
    %106 = vmatpush2.msra.mxu0 0.0
    %107 = vmatprep.subr.mxu0 0.0
    %108 = vmatpush2.msra.mxu0 0.0
    %109 = vmatprep.subr.mxu0 0.0
    %110 = vmatpush2.msra.mxu0 0.0
    %111 = vmatprep.subr.mxu0 0.0
    %112 = vmatpush2.msra.mxu0 0.0
    %113 = vmatprep.subr.mxu0 0.0
    %114 = vmatpush2.msra.mxu0 0.0
    %115 = vmatprep.subr.mxu0 0.0
    %116 = vmatpush2.msra.mxu0 0.0
    %117 = vmatprep.subr.mxu0 0.0
    %118 = vmatpush2.msra.mxu0 0.0
    %119 = vmatprep.subr.mxu0 0.0
    %120 = vmatpush2.msra.mxu0 0.0
    %121 = vmatprep.subr.mxu0 0.0
    %122 = vmatpush2.msra.mxu0 0.0
    %123 = vmatprep.subr.mxu0 0.0
    %124 = vmatpush2.msra.mxu0 0.0
    %125 = vmatprep.subr.mxu0 0.0
    %126 = vmatpush2.msra.mxu0 0.0
    %127 = vmatprep.mubr.f32.mxu0 0.0
    %128 = vmatmul.mubr.f32.gmra.mxu0 %v61
    %v129 = vpop.f32.mrf.mxu0
    %v130 = vadd.f32 %v57, %v129
    %v131 = vpop.f32.mrf.mxu0
    %132 = vdwg.mxu0
    %vm133 = vcmp.gt.f32.partialorder %v130, 0.0
    %v134 = vstv %s44
    %v135 = vmul.f32 %v134, %v130
    %v136 = vsel %vm133, %v130, %v135
    %v137 = vld [vmem:[#allocation4] sm:$0xff]
    %v138 = vld [vmem:[#allocation4 + $0x8] sm:$0xff]
    %v139 = vld [vmem:[#allocation4 + $0x10] sm:$0xff]
    %v140 = vld [vmem:[#allocation4 + $0x18] sm:$0xff]
    %v141 = vld [vmem:[#allocation4 + $0x20] sm:$0xff]
    %v142 = vld [vmem:[#allocation4 + $0x28] sm:$0xff]
    %v143 = vld [vmem:[#allocation4 + $0x30] sm:$0xff]
    %v144 = vld [vmem:[#allocation4 + $0x38] sm:$0xff]
    %v145 = vld [vmem:[#allocation4 + $0x40] sm:$0xff]
    %v146 = vld [vmem:[#allocation4 + $0x48] sm:$0xff]
    %v147 = vld [vmem:[#allocation4 + $0x50] sm:$0xff]
    %v148 = vld [vmem:[#allocation4 + $0x58] sm:$0xff]
    %v149 = vld [vmem:[#allocation4 + $0x60] sm:$0xff]
    %v150 = vld [vmem:[#allocation4 + $0x68] sm:$0xff]
    %v151 = vld [vmem:[#allocation4 + $0x70] sm:$0xff]
    %v152 = vld [vmem:[#allocation4 + $0x78] sm:$0xff]
    %s153 = scalar_lea.vmem %s5, 1
    %v154 = vld [vmem:[%s153] sm:$0x1]
    %v156 = vlaneseq
    %v157 = vshrl.u32 %v156, 7
    %v158 = vsub.s32 0, %v157
    %v159 = vrot.slane %v154, %v158
    %161 = vmatprep.subr.mxu0 0.0
    %162 = vmatpush1.msra.mxu0 %v152
    %163 = vmatprep.subr.mxu0 0.0
    %164 = vmatpush1.msra.mxu0 %v151
    %165 = vmatprep.subr.mxu0 0.0
    %166 = vmatpush1.msra.mxu0 %v150
    %167 = vmatprep.subr.mxu0 0.0
    %168 = vmatpush1.msra.mxu0 %v149
    %169 = vmatprep.subr.mxu0 0.0
    %170 = vmatpush1.msra.mxu0 %v148
    %171 = vmatprep.subr.mxu0 0.0
    %172 = vmatpush1.msra.mxu0 %v147
    %173 = vmatprep.subr.mxu0 0.0
    %174 = vmatpush1.msra.mxu0 %v146
    %175 = vmatprep.subr.mxu0 0.0
    %176 = vmatpush1.msra.mxu0 %v145
    %177 = vmatprep.subr.mxu0 0.0
    %178 = vmatpush1.msra.mxu0 %v144
    %179 = vmatprep.subr.mxu0 0.0
    %180 = vmatpush1.msra.mxu0 %v143
    %181 = vmatprep.subr.mxu0 0.0
    %182 = vmatpush1.msra.mxu0 %v142
    %183 = vmatprep.subr.mxu0 0.0
    %184 = vmatpush1.msra.mxu0 %v141
    %185 = vmatprep.subr.mxu0 0.0
    %186 = vmatpush1.msra.mxu0 %v140
    %187 = vmatprep.subr.mxu0 0.0
    %188 = vmatpush1.msra.mxu0 %v139
    %189 = vmatprep.subr.mxu0 0.0
    %190 = vmatpush1.msra.mxu0 %v138
    %191 = vmatprep.subr.mxu0 0.0
    %192 = vmatpush1.msra.mxu0 %v137
    %193 = vmatprep.subr.mxu0 0.0
    %194 = vmatpush2.msra.mxu0 0.0
    %195 = vmatprep.subr.mxu0 0.0
    %196 = vmatpush2.msra.mxu0 0.0
    %197 = vmatprep.subr.mxu0 0.0
    %198 = vmatpush2.msra.mxu0 0.0
    %199 = vmatprep.subr.mxu0 0.0
    %200 = vmatpush2.msra.mxu0 0.0
    %201 = vmatprep.subr.mxu0 0.0
    %202 = vmatpush2.msra.mxu0 0.0
    %203 = vmatprep.subr.mxu0 0.0
    %204 = vmatpush2.msra.mxu0 0.0
    %205 = vmatprep.subr.mxu0 0.0
    %206 = vmatpush2.msra.mxu0 0.0
    %207 = vmatprep.subr.mxu0 0.0
    %208 = vmatpush2.msra.mxu0 0.0
    %209 = vmatprep.subr.mxu0 0.0
    %210 = vmatpush2.msra.mxu0 0.0
    %211 = vmatprep.subr.mxu0 0.0
    %212 = vmatpush2.msra.mxu0 0.0
    %213 = vmatprep.subr.mxu0 0.0
    %214 = vmatpush2.msra.mxu0 0.0
    %215 = vmatprep.subr.mxu0 0.0
    %216 = vmatpush2.msra.mxu0 0.0
    %217 = vmatprep.subr.mxu0 0.0
    %218 = vmatpush2.msra.mxu0 0.0
    %219 = vmatprep.subr.mxu0 0.0
    %220 = vmatpush2.msra.mxu0 0.0
    %221 = vmatprep.subr.mxu0 0.0
    %222 = vmatpush2.msra.mxu0 0.0
    %223 = vmatprep.subr.mxu0 0.0
    %224 = vmatpush2.msra.mxu0 0.0
    %225 = vmatprep.mubr.f32.mxu0 0.0
    %226 = vmatmul.mubr.f32.gmra.mxu0 %v136
    %v227 = vpop.f32.mrf.mxu0
    %v228 = vadd.f32 %v159, %v227
    %v229 = vpop.f32.mrf.mxu0
    %230 = vdwg.mxu0
    %vm231 = vcmp.gt.f32.partialorder %v228, 0.0
    %v232 = vstv %s45
    %v233 = vmul.f32 %v232, %v228
    %v234 = vsel %vm231, %v228, %v233
    %s235 = scalar_lea.vmem [#allocation4], 128
    %v236 = vld [vmem:[%s235] sm:$0xff]
    %v237 = vld [vmem:[%s235 + $0x8] sm:$0xff]
    %v238 = vld [vmem:[%s235 + $0x10] sm:$0xff]
    %v239 = vld [vmem:[%s235 + $0x18] sm:$0xff]
    %v240 = vld [vmem:[%s235 + $0x20] sm:$0xff]
    %v241 = vld [vmem:[%s235 + $0x28] sm:$0xff]
    %v242 = vld [vmem:[%s235 + $0x30] sm:$0xff]
    %v243 = vld [vmem:[%s235 + $0x38] sm:$0xff]
    %v244 = vld [vmem:[%s235 + $0x40] sm:$0xff]
    %v245 = vld [vmem:[%s235 + $0x48] sm:$0xff]
    %v246 = vld [vmem:[%s235 + $0x50] sm:$0xff]
    %v247 = vld [vmem:[%s235 + $0x58] sm:$0xff]
    %v248 = vld [vmem:[%s235 + $0x60] sm:$0xff]
    %v249 = vld [vmem:[%s235 + $0x68] sm:$0xff]
    %v250 = vld [vmem:[%s235 + $0x70] sm:$0xff]
    %v251 = vld [vmem:[%s235 + $0x78] sm:$0xff]
    %s252 = scalar_lea.vmem %s5, 2
    %v253 = vld [vmem:[%s252] sm:$0x1]
    %v255 = vlaneseq
    %v256 = vshrl.u32 %v255, 7
    %v257 = vsub.s32 0, %v256
    %v258 = vrot.slane %v253, %v257
    %260 = vmatprep.subr.mxu0 0.0
    %261 = vmatpush1.msra.mxu0 %v251
    %262 = vmatprep.subr.mxu0 0.0
    %263 = vmatpush1.msra.mxu0 %v250
    %264 = vmatprep.subr.mxu0 0.0
    %265 = vmatpush1.msra.mxu0 %v249
    %266 = vmatprep.subr.mxu0 0.0
    %267 = vmatpush1.msra.mxu0 %v248
    %268 = vmatprep.subr.mxu0 0.0
    %269 = vmatpush1.msra.mxu0 %v247
    %270 = vmatprep.subr.mxu0 0.0
    %271 = vmatpush1.msra.mxu0 %v246
    %272 = vmatprep.subr.mxu0 0.0
    %273 = vmatpush1.msra.mxu0 %v245
    %274 = vmatprep.subr.mxu0 0.0
    %275 = vmatpush1.msra.mxu0 %v244
    %276 = vmatprep.subr.mxu0 0.0
    %277 = vmatpush1.msra.mxu0 %v243
    %278 = vmatprep.subr.mxu0 0.0
    %279 = vmatpush1.msra.mxu0 %v242
    %280 = vmatprep.subr.mxu0 0.0
    %281 = vmatpush1.msra.mxu0 %v241
    %282 = vmatprep.subr.mxu0 0.0
    %283 = vmatpush1.msra.mxu0 %v240
    %284 = vmatprep.subr.mxu0 0.0
    %285 = vmatpush1.msra.mxu0 %v239
    %286 = vmatprep.subr.mxu0 0.0
    %287 = vmatpush1.msra.mxu0 %v238
    %288 = vmatprep.subr.mxu0 0.0
    %289 = vmatpush1.msra.mxu0 %v237
    %290 = vmatprep.subr.mxu0 0.0
    %291 = vmatpush1.msra.mxu0 %v236
    %292 = vmatprep.subr.mxu0 0.0
    %293 = vmatpush2.msra.mxu0 0.0
    %294 = vmatprep.subr.mxu0 0.0
    %295 = vmatpush2.msra.mxu0 0.0
    %296 = vmatprep.subr.mxu0 0.0
    %297 = vmatpush2.msra.mxu0 0.0
    %298 = vmatprep.subr.mxu0 0.0
    %299 = vmatpush2.msra.mxu0 0.0
    %300 = vmatprep.subr.mxu0 0.0
    %301 = vmatpush2.msra.mxu0 0.0
    %302 = vmatprep.subr.mxu0 0.0
    %303 = vmatpush2.msra.mxu0 0.0
    %304 = vmatprep.subr.mxu0 0.0
    %305 = vmatpush2.msra.mxu0 0.0
    %306 = vmatprep.subr.mxu0 0.0
    %307 = vmatpush2.msra.mxu0 0.0
    %308 = vmatprep.subr.mxu0 0.0
    %309 = vmatpush2.msra.mxu0 0.0
    %310 = vmatprep.subr.mxu0 0.0
    %311 = vmatpush2.msra.mxu0 0.0
    %312 = vmatprep.subr.mxu0 0.0
    %313 = vmatpush2.msra.mxu0 0.0
    %314 = vmatprep.subr.mxu0 0.0
    %315 = vmatpush2.msra.mxu0 0.0
    %316 = vmatprep.subr.mxu0 0.0
    %317 = vmatpush2.msra.mxu0 0.0
    %318 = vmatprep.subr.mxu0 0.0
    %319 = vmatpush2.msra.mxu0 0.0
    %320 = vmatprep.subr.mxu0 0.0
    %321 = vmatpush2.msra.mxu0 0.0
    %322 = vmatprep.subr.mxu0 0.0
    %323 = vmatpush2.msra.mxu0 0.0
    %324 = vmatprep.mubr.f32.mxu0 0.0
    %325 = vmatmul.mubr.f32.gmra.mxu0 %v234
    %v326 = vpop.f32.mrf.mxu0
    %v327 = vadd.f32 %v258, %v326
    %v328 = vpop.f32.mrf.mxu0
    %329 = vdwg.mxu0
    %vm330 = vcmp.gt.f32.partialorder %v327, 0.0
    %v331 = vstv %s46
    %v332 = vmul.f32 %v331, %v327
    %v333 = vsel %vm330, %v327, %v332
    %v334 = vld [vmem:[%s4] sm:$0xff]
    %v335 = vld [vmem:[%s4 + $0x8] sm:$0xff]
    %v336 = vld [vmem:[%s4 + $0x10] sm:$0xff]
    %v337 = vld [vmem:[%s4 + $0x18] sm:$0xff]
    %v338 = vld [vmem:[%s4 + $0x20] sm:$0xff]
    %v339 = vld [vmem:[%s4 + $0x28] sm:$0xff]
    %v340 = vld [vmem:[%s4 + $0x30] sm:$0xff]
    %v341 = vld [vmem:[%s4 + $0x38] sm:$0xff]
    %v342 = vld [vmem:[%s4 + $0x40] sm:$0xff]
    %v343 = vld [vmem:[%s4 + $0x48] sm:$0xff]
    %v344 = vld [vmem:[%s4 + $0x50] sm:$0xff]
    %v345 = vld [vmem:[%s4 + $0x58] sm:$0xff]
    %v346 = vld [vmem:[%s4 + $0x60] sm:$0xff]
    %v347 = vld [vmem:[%s4 + $0x68] sm:$0xff]
    %v348 = vld [vmem:[%s4 + $0x70] sm:$0xff]
    %v349 = vld [vmem:[%s4 + $0x78] sm:$0xff]
    %v350 = vld [vmem:[%s6] sm:$0x1]
    %v352 = vlaneseq
    %v353 = vshrl.u32 %v352, 7
    %v354 = vsub.s32 0, %v353
    %v355 = vrot.slane %v350, %v354
    %357 = vmatprep.subr.mxu0 0.0
    %358 = vmatpush1.msra.mxu0 %v349
    %359 = vmatprep.subr.mxu0 0.0
    %360 = vmatpush1.msra.mxu0 %v348
    %361 = vmatprep.subr.mxu0 0.0
    %362 = vmatpush1.msra.mxu0 %v347
    %363 = vmatprep.subr.mxu0 0.0
    %364 = vmatpush1.msra.mxu0 %v346
    %365 = vmatprep.subr.mxu0 0.0
    %366 = vmatpush1.msra.mxu0 %v345
    %367 = vmatprep.subr.mxu0 0.0
    %368 = vmatpush1.msra.mxu0 %v344
    %369 = vmatprep.subr.mxu0 0.0
    %370 = vmatpush1.msra.mxu0 %v343
    %371 = vmatprep.subr.mxu0 0.0
    %372 = vmatpush1.msra.mxu0 %v342
    %373 = vmatprep.subr.mxu0 0.0
    %374 = vmatpush1.msra.mxu0 %v341
    %375 = vmatprep.subr.mxu0 0.0
    %376 = vmatpush1.msra.mxu0 %v340
    %377 = vmatprep.subr.mxu0 0.0
    %378 = vmatpush1.msra.mxu0 %v339
    %379 = vmatprep.subr.mxu0 0.0
    %380 = vmatpush1.msra.mxu0 %v338
    %381 = vmatprep.subr.mxu0 0.0
    %382 = vmatpush1.msra.mxu0 %v337
    %383 = vmatprep.subr.mxu0 0.0
    %384 = vmatpush1.msra.mxu0 %v336
    %385 = vmatprep.subr.mxu0 0.0
    %386 = vmatpush1.msra.mxu0 %v335
    %387 = vmatprep.subr.mxu0 0.0
    %388 = vmatpush1.msra.mxu0 %v334
    %389 = vmatprep.subr.mxu0 0.0
    %390 = vmatpush2.msra.mxu0 0.0
    %391 = vmatprep.subr.mxu0 0.0
    %392 = vmatpush2.msra.mxu0 0.0
    %393 = vmatprep.subr.mxu0 0.0
    %394 = vmatpush2.msra.mxu0 0.0
    %395 = vmatprep.subr.mxu0 0.0
    %396 = vmatpush2.msra.mxu0 0.0
    %397 = vmatprep.subr.mxu0 0.0
    %398 = vmatpush2.msra.mxu0 0.0
    %399 = vmatprep.subr.mxu0 0.0
    %400 = vmatpush2.msra.mxu0 0.0
    %401 = vmatprep.subr.mxu0 0.0
    %402 = vmatpush2.msra.mxu0 0.0
    %403 = vmatprep.subr.mxu0 0.0
    %404 = vmatpush2.msra.mxu0 0.0
    %405 = vmatprep.subr.mxu0 0.0
    %406 = vmatpush2.msra.mxu0 0.0
    %407 = vmatprep.subr.mxu0 0.0
    %408 = vmatpush2.msra.mxu0 0.0
    %409 = vmatprep.subr.mxu0 0.0
    %410 = vmatpush2.msra.mxu0 0.0
    %411 = vmatprep.subr.mxu0 0.0
    %412 = vmatpush2.msra.mxu0 0.0
    %413 = vmatprep.subr.mxu0 0.0
    %414 = vmatpush2.msra.mxu0 0.0
    %415 = vmatprep.subr.mxu0 0.0
    %416 = vmatpush2.msra.mxu0 0.0
    %417 = vmatprep.subr.mxu0 0.0
    %418 = vmatpush2.msra.mxu0 0.0
    %419 = vmatprep.subr.mxu0 0.0
    %420 = vmatpush2.msra.mxu0 0.0
    %421 = vmatprep.mubr.f32.mxu0 0.0
    %422 = vmatmul.mubr.f32.gmra.mxu0 %v333
    %v423 = vpop.f32.mrf.mxu0
    %v424 = vadd.f32 %v355, %v423
    %v425 = vpop.f32.mrf.mxu0
    %426 = vdwg.mxu0
    %vm427 = vcmask 15360
    %428 = vst.msk [vmem:[%s7] sm:$0xff] %vm427, %v424
    // Predicated region
    $region30: #{tpu_custom_call.1} parent=1 // pred_check
      _
    $region31: #{tpu_custom_call.1} parent=1 // pred_check_branch
      %430 = sbr.rel (0) target = $region33
    $region32: #{tpu_custom_call.1} parent=1 // pred_region
      _
    $region33: #{tpu_custom_call.1} parent=1 // pred_fallthru
      _
    // Predicated region
    $region34: #{tpu_custom_call.1} parent=1 // pred_check
      _
    $region35: #{tpu_custom_call.1} parent=1 // pred_check_branch
      %432 = sbr.rel (0) target = $region37
    $region36: #{tpu_custom_call.1} parent=1 // pred_region
      _
    $region37: #{tpu_custom_call.1} parent=1 // pred_fallthru
      _
    %433 = vsyncpa [#allocation5], 1

</llo_original>
